<compile_context>
chip_gen: v6e
topology: v6e:2x2x1
jax: 0.10.0
libtpu: 0.0.40
codegen_flags: <defaults>
</compile_context>

<pallas_src>
import jax
import jax.numpy as jnp
from jax.experimental import pallas as pl
from jax.experimental.pallas import tpu as pltpu


def _gnn_mean_kernel(adj_ref, h_ref, w_ref, b_ref, o_ref):
    tile_n = adj_ref.shape[0]
    row0 = pl.multiple_of(pl.program_id(0) * tile_n, tile_n)

    a = adj_ref[...]                          # [TILE_N, N]  in-adjacency rows of this dst tile
    h_all = h_ref[...]                        # [N, F_in]    resident node features
    h_self = h_ref[pl.ds(row0, tile_n), :]    # [TILE_N, F_in] self features for this tile

    # mailbox sum of copy_src messages == A_tile @ h  (MXU, f32 accumulate)
    nei_sum = jnp.dot(a, h_all, preferred_element_type=jnp.float32)

    # in_degree = row-sum of adjacency (XLU); clamp to avoid divide-by-zero.
    # TODO(synk): DGL degree-bucketing skips zero-in-degree nodes entirely
    #             (their 'h' stays untouched); here we clamp deg to 1. The demo
    #             graph guarantees in_degree >= 1 so results are identical.
    deg = jnp.maximum(jnp.sum(a, axis=-1, keepdims=True), 1.0)

    agg = (nei_sum + h_self) / deg            # MeanAggregator.concat

    # linear + relu activation (MXU + VPU)
    out = jnp.dot(agg, w_ref[...], preferred_element_type=jnp.float32) + b_ref[...]
    out = jnp.maximum(out, 0.0)
    # (Aggregator.forward's `norm` computation is discarded in PyTorch — omitted.)
    o_ref[...] = out.astype(o_ref.dtype)


def gnn_mean_forward(adj, h, w, b, *, tile_n=256):
    """GNNLayer (mean aggregator) forward.

    adj: [N, N] f32, adj[i, j] = 1 iff edge j -> i (j is an in-neighbor of i).
    h:   [N, F_in] f32 node features.
    w:   [F_in, F_out] f32 (nn.Linear weight pre-transposed to [in, out]).
    b:   [1, F_out] f32 bias.
    """
    n, f_in = h.shape
    f_out = w.shape[1]
    assert adj.shape == (n, n), "adjacency must be [N, N]"
    assert w.shape[0] == f_in and b.shape == (1, f_out)

    tile_n = min(tile_n, n)
    assert n % tile_n == 0, "N must be a multiple of tile_n"
    assert tile_n % 8 == 0 or tile_n == n, "tile_n must be a multiple of 8"

    grid = (n // tile_n,)

    flops = int(2 * n * n * f_in + 2 * n * f_in * f_out)
    bytes_accessed = int(4 * (n * n + n * f_in + f_in * f_out + f_out + n * f_out))

    return pl.pallas_call(
        _gnn_mean_kernel,
        out_shape=jax.ShapeDtypeStruct((n, f_out), h.dtype),
        grid=grid,
        in_specs=[
            pl.BlockSpec((tile_n, n), lambda i: (i, 0)),     # adjacency rows: pipelined per tile
            pl.BlockSpec((n, f_in), lambda i: (0, 0)),       # h: resident across all grid steps
            pl.BlockSpec((f_in, f_out), lambda i: (0, 0)),   # W: resident
            pl.BlockSpec((1, f_out), lambda i: (0, 0)),      # b: resident
        ],
        out_specs=pl.BlockSpec((tile_n, f_out), lambda i: (i, 0)),
        compiler_params=pltpu.CompilerParams(
            dimension_semantics=("parallel",),               # shard rows across TCs on v7x
        ),
        cost_estimate=pl.CostEstimate(
            flops=flops, transcendentals=0, bytes_accessed=bytes_accessed),
    )(adj, h, w, b)


def init_params(key, in_feats, out_feats):
    """PyTorch-style init: xavier_uniform_(gain=relu) for W, default uniform bias.
    Weight returned pre-transposed to [in, out]."""
    kw, kb = jax.random.split(key)
    gain = jnp.sqrt(2.0)                                     # calculate_gain('relu')
    w_bound = gain * jnp.sqrt(6.0 / (in_feats + out_feats))
    w = jax.random.uniform(kw, (in_feats, out_feats), jnp.float32, -w_bound, w_bound)
    b_bound = 1.0 / jnp.sqrt(jnp.float32(in_feats))
    b = jax.random.uniform(kb, (1, out_feats), jnp.float32, -b_bound, b_bound)
    return w, b


if __name__ == "__main__":
    key = jax.random.PRNGKey(0)
    k_a, k_h, k_p = jax.random.split(key, 3)

    # Small, lane-dense demo shapes: 64 nodes, 128-wide features in/out,
    # 16-row tiles -> grid of 4 steps exercises the pipelined row axis.
    N, IN_FEATS, OUT_FEATS, TILE_N = 64, 128, 128, 16

    # Random directed graph; a ring edge (i-1) -> i guarantees in_degree >= 1.
    a_rand = (jax.random.uniform(k_a, (N, N)) < 0.10).astype(jnp.float32)
    ring = jnp.roll(jnp.eye(N, dtype=jnp.float32), shift=1, axis=0)  # A[i, i-1] = 1
    adj = jnp.maximum(a_rand, ring)

    h = jax.random.normal(k_h, (N, IN_FEATS), jnp.float32)
    w, b = init_params(k_p, IN_FEATS, OUT_FEATS)

    # TODO(synk): nn.Dropout is identity in eval mode; training-mode dropout is
    #             not implemented in the kernel.
    out = gnn_mean_forward(adj, h, w, b, tile_n=TILE_N)
    out = jax.block_until_ready(out)

    # Plain-JAX reference (high-precision matmuls).
    deg = jnp.maximum(jnp.sum(adj, axis=1, keepdims=True), 1.0)
    agg = (jnp.dot(adj, h, precision=jax.lax.Precision.HIGHEST) + h) / deg
    ref = jnp.maximum(
        jnp.dot(agg, w, precision=jax.lax.Precision.HIGHEST) + b, 0.0)

    assert out.shape == (N, OUT_FEATS)
    assert jnp.allclose(out, ref, atol=1e-3, rtol=1e-3)

    print("KERNEL_OK")
</pallas_src>

<mosaic_0001>
module attributes {stable_mosaic.version = 11 : i64} {
  func.func @_gnn_mean_kernel(%arg0: i32, %arg1: memref<16x64xf32, #tpu.memory_space<vmem>>, %arg2: memref<64x128xf32, #tpu.memory_space<vmem>>, %arg3: memref<128x128xf32, #tpu.memory_space<vmem>>, %arg4: memref<1x128xf32, #tpu.memory_space<vmem>>, %arg5: memref<16x128xf32, #tpu.memory_space<vmem>>) attributes {dimension_semantics = [#tpu.dimension_semantics<parallel>], iteration_bounds = array<i64: 4>, scalar_prefetch = 0 : i64, scratch_operands = 0 : i64, tpu.core_type = #tpu.core_type<tc>, window_params = [{transform_indices = @transform_0, window_bounds = array<i64: 16, 64>}, {pipeline_mode = #tpu.pipeline_mode<synchronous>, transform_indices = @transform_1, window_bounds = array<i64: 64, 128>}, {pipeline_mode = #tpu.pipeline_mode<synchronous>, transform_indices = @transform_2, window_bounds = array<i64: 128, 128>}, {pipeline_mode = #tpu.pipeline_mode<synchronous>, transform_indices = @transform_3, window_bounds = array<i64: 1, 128>}, {transform_indices = @transform_4, window_bounds = array<i64: 16, 128>}]} {
    %c16_i32 = arith.constant 16 : i32
    %0 = arith.muli %arg0, %c16_i32 : i32
    %1 = tpu.assume_multiple %0, 16 : i32
    %c0 = arith.constant 0 : index
    %c0_0 = arith.constant 0 : index
    %2 = vector.load %arg1[%c0, %c0_0] : memref<16x64xf32, #tpu.memory_space<vmem>>, vector<16x64xf32>
    %c0_1 = arith.constant 0 : index
    %c0_2 = arith.constant 0 : index
    %3 = vector.load %arg2[%c0_1, %c0_2] : memref<64x128xf32, #tpu.memory_space<vmem>>, vector<64x128xf32>
    %4 = arith.index_cast %1 : i32 to index
    %c0_3 = arith.constant 0 : index
    %5 = vector.load %arg2[%4, %c0_3] : memref<64x128xf32, #tpu.memory_space<vmem>>, vector<16x128xf32>
    %cst = arith.constant dense<0.000000e+00> : vector<16x128xf32>
    %6 = tpu.matmul %2, %3, %cst {dimension_numbers = #tpu.dot_dimension_numbers<[1], [0], [0], [1], [0, 0, 1, 1], [], []>} : vector<16x64xf32>, vector<64x128xf32>, vector<16x128xf32> -> vector<16x128xf32>
    %cst_4 = arith.constant dense<0.000000e+00> : vector<16xf32>
    %7 = vector.multi_reduction <add>, %2, %cst_4 [1] : vector<16x64xf32> to vector<16xf32>
    %8 = vector.shape_cast %7 : vector<16xf32> to vector<16x1xf32>
    %cst_5 = arith.constant 1.000000e+00 : f32
    %9 = vector.broadcast %cst_5 : f32 to vector<16x1xf32>
    %10 = arith.maximumf %8, %9 : vector<16x1xf32>
    %11 = arith.addf %6, %5 : vector<16x128xf32>
    %12 = vector.broadcast %10 : vector<16x1xf32> to vector<16x128xf32>
    %13 = arith.divf %11, %12 : vector<16x128xf32>
    %c0_6 = arith.constant 0 : index
    %c0_7 = arith.constant 0 : index
    %14 = vector.load %arg3[%c0_6, %c0_7] : memref<128x128xf32, #tpu.memory_space<vmem>>, vector<128x128xf32>
    %cst_8 = arith.constant dense<0.000000e+00> : vector<16x128xf32>
    %15 = tpu.matmul %13, %14, %cst_8 {dimension_numbers = #tpu.dot_dimension_numbers<[1], [0], [0], [1], [0, 0, 1, 1], [], []>} : vector<16x128xf32>, vector<128x128xf32>, vector<16x128xf32> -> vector<16x128xf32>
    %c0_9 = arith.constant 0 : index
    %c0_10 = arith.constant 0 : index
    %16 = vector.load %arg4[%c0_9, %c0_10] : memref<1x128xf32, #tpu.memory_space<vmem>>, vector<1x128xf32>
    %17 = vector.broadcast %16 : vector<1x128xf32> to vector<16x128xf32>
    %18 = arith.addf %15, %17 : vector<16x128xf32>
    %cst_11 = arith.constant 0.000000e+00 : f32
    %19 = vector.broadcast %cst_11 : f32 to vector<16x128xf32>
    %20 = arith.maximumf %18, %19 : vector<16x128xf32>
    %c0_12 = arith.constant 0 : index
    %c0_13 = arith.constant 0 : index
    %21 = vector.load %arg5[%c0_12, %c0_13] : memref<16x128xf32, #tpu.memory_space<vmem>>, vector<16x128xf32>
    tpu.vector_store %arg5[%c0_12, %c0_13], %20 {strides = array<i32>} : memref<16x128xf32, #tpu.memory_space<vmem>>, vector<16x128xf32>,
    return
  }
  func.func @transform_0(%arg0: i32) -> (i32, i32) {
    %c0_i32 = arith.constant 0 : i32
    %c0_i32_0 = arith.constant 0 : i32
    return %arg0, %c0_i32 : i32, i32
  }
  func.func @transform_1(%arg0: i32) -> (i32, i32) {
    %c0_i32 = arith.constant 0 : i32
    %c0_i32_0 = arith.constant 0 : i32
    %c0_i32_1 = arith.constant 0 : i32
    return %c0_i32, %c0_i32_0 : i32, i32
  }
  func.func @transform_2(%arg0: i32) -> (i32, i32) {
    %c0_i32 = arith.constant 0 : i32
    %c0_i32_0 = arith.constant 0 : i32
    %c0_i32_1 = arith.constant 0 : i32
    return %c0_i32, %c0_i32_0 : i32, i32
  }
  func.func @transform_3(%arg0: i32) -> (i32, i32) {
    %c0_i32 = arith.constant 0 : i32
    %c0_i32_0 = arith.constant 0 : i32
    %c0_i32_1 = arith.constant 0 : i32
    return %c0_i32, %c0_i32_0 : i32, i32
  }
  func.func @transform_4(%arg0: i32) -> (i32, i32) {
    %c0_i32 = arith.constant 0 : i32
    %c0_i32_0 = arith.constant 0 : i32
    return %arg0, %c0_i32 : i32, i32
  }
}

</mosaic_0001>

<llo_original>
// kernel: tpu_custom_call.1
$region0: #{tpu_custom_call.1}
  #allocation0 [shape = 'u32[]', space=smem, size = 0x4, offset = 0x4, fixed_abs, tag = 'smem constant byte address 0x4 - core index']
  #allocation1 [shape = 'u32[144,128]{1,0:T(1,128)}', space=vmem, size = 0x12000, scoped, tag = 'internal scratch']
  %s0 = inlined_call_operand.hbm [shape: f32[64,64], index: 0, kind: input, shape index: {}]
  %s1 = inlined_call_operand.hbm [shape: f32[64,128], index: 1, kind: input, shape index: {}]
  %s2 = inlined_call_operand.hbm [shape: f32[128,128], index: 2, kind: input, shape index: {}]
  %s3 = inlined_call_operand.vmem [shape: f32[1,128], index: 3, kind: input, shape index: {}]
  %s4 = inlined_call_operand.hbm [shape: f32[64,128], index: 4, kind: output, shape index: {}]
  %s5 = sld [smem:[#allocation0]]
  $region61: #{tpu_custom_call.1} parent=0
    _
  %s7 = ssub.s32 1, %s5
  %s8 = scalar_select 0, %s7, %s5
  $region1: #{tpu_custom_call.1} parent=0
    #allocation2 [shape = 'u8[16384]{0}', space=vmem, size = 0x4000, scoped, tag = 'input window, operand 0']
    #allocation3 [shape = 's32[2]{0}', space=sflag, size = 0x8, scoped, tag = 'scoped memory for tpu_custom_call.1']
    #allocation4 [shape = 's32[2]{0}', space=sflag, size = 0x8, scoped, tag = 'scoped memory for tpu_custom_call.1']
    #allocation5 [shape = 'u8[32768]{0}', space=vmem, size = 0x8000, scoped, tag = 'input window, operand 1, single buffered']
    #allocation6 [shape = 's32[1]{0}', space=sflag, size = 0x4, scoped, tag = 'scoped memory for tpu_custom_call.1']
    #allocation7 [shape = 'u8[65536]{0}', space=vmem, size = 0x10000, scoped, tag = 'input window, operand 2, single buffered']
    #allocation8 [shape = 'u8[16384]{0}', space=vmem, size = 0x4000, scoped, tag = 'output window, operand 0']
    %9 = vsyncpa [#allocation3], 0
    %s10 = scalar_lea.sflag [#allocation3], 1
    %11 = vsyncpa %s10, 0
    %12 = vsyncpa [#allocation6], 0
    %13 = vsyncpa [#allocation4], 0
    %s14 = scalar_lea.sflag [#allocation4], 1
    %15 = vsyncpa %s14, 0
    loop: start=0, step=1, limit=6
    $region2: #{tpu_custom_call.1} parent=1 // loop_pre_header
      _
    $region3: #{tpu_custom_call.1} parent=1 // loop_header
      %s17 = sphi 0, %s21
      %p18 = scmp.ge.s32.totalorder %s17, 6
      %s27 = sphi 0, %s29
      %s30 = sphi 0, %s27
      %s31 = sphi 0, %s30
      %s47 = sphi 0, %s31
      %s51 = sphi 0, %s51
      %s53 = sphi 0, %s51
      %s54 = sphi 0, %s53
      %s68 = sphi 0, %s54
      %s72 = sphi 0, %s72
      %s74 = sphi 0, %s72
      %s75 = sphi 0, %s74
      %s89 = sphi 0, %s75
      %s93 = sphi 0, %s93
      %s95 = sphi 0, %s93
      %s96 = sphi 0, %s95
      %s110 = sphi 0, %s96
      %s116 = sphi 0, %s118
      %s119 = sphi 0, %s116
      %s120 = sphi 0, %s119
      %s136 = sphi 0, %s120
    $region4: #{tpu_custom_call.1} parent=1 // loop_header_branch
      %20 = sbr.rel (%p18) target = $region8
    $region5: #{tpu_custom_call.1} parent=1 // loop_body
      %s22 = ssub.s32 %s17, 1
      %s23 = ssub.s32 %s17, 2
      %s24 = sadd.s32 %s17, 1
      %s25 = ssub.s32 %s17, %s24
      %p26 = scmp.eq.s32.totalorder %s25, 0
      %s28 = sadd.s32 %s27, 1
      %s29 = scalar_select %p26, %s27, %s28
      %p32 = pneg %p26
      %p33 = scmp.eq.s32.totalorder %s17, 3
      %p34 = por %p32, %p33
      %p35 = scmp.ne.s32.totalorder %s27, %s30
      %p36 = scmp.eq.s32.totalorder %s17, 0
      %p37 = por %p35, %p36
      %p38 = scmp.ne.s32.totalorder %s27, %s30
      %p39 = scmp.eq.s32.totalorder %s22, 3
      %p40 = por %p38, %p39
      %p41 = scmp.ne.s32.totalorder %s30, %s31
      %p42 = scmp.eq.s32.totalorder %s22, 0
      %p43 = por %p41, %p42
      %p44 = scmp.ne.s32.totalorder %s30, %s31
      %p45 = scmp.eq.s32.totalorder %s23, 3
      %p46 = por %p44, %p45
      %p48 = scmp.ne.s32.totalorder %s31, %s47
      %p49 = scmp.eq.s32.totalorder %s23, 0
      %p50 = por %p48, %p49
      %s52 = sadd.s32 %s51, 1
      %p55 = scmp.eq.s32.totalorder %s17, 3
      %p56 = scmp.ne.s32.totalorder %s51, %s53
      %p57 = scmp.eq.s32.totalorder %s17, 0
      %p58 = por %p56, %p57
      %p59 = scmp.ne.s32.totalorder %s51, %s53
      %p60 = scmp.eq.s32.totalorder %s22, 3
      %p61 = por %p59, %p60
      %p62 = scmp.ne.s32.totalorder %s53, %s54
      %p63 = scmp.eq.s32.totalorder %s22, 0
      %p64 = por %p62, %p63
      %p65 = scmp.ne.s32.totalorder %s53, %s54
      %p66 = scmp.eq.s32.totalorder %s23, 3
      %p67 = por %p65, %p66
      %p69 = scmp.ne.s32.totalorder %s54, %s68
      %p70 = scmp.eq.s32.totalorder %s23, 0
      %p71 = por %p69, %p70
      %s73 = sadd.s32 %s72, 1
      %p76 = scmp.eq.s32.totalorder %s17, 3
      %p77 = scmp.ne.s32.totalorder %s72, %s74
      %p78 = scmp.eq.s32.totalorder %s17, 0
      %p79 = por %p77, %p78
      %p80 = scmp.ne.s32.totalorder %s72, %s74
      %p81 = scmp.eq.s32.totalorder %s22, 3
      %p82 = por %p80, %p81
      %p83 = scmp.ne.s32.totalorder %s74, %s75
      %p84 = scmp.eq.s32.totalorder %s22, 0
      %p85 = por %p83, %p84
      %p86 = scmp.ne.s32.totalorder %s74, %s75
      %p87 = scmp.eq.s32.totalorder %s23, 3
      %p88 = por %p86, %p87
      %p90 = scmp.ne.s32.totalorder %s75, %s89
      %p91 = scmp.eq.s32.totalorder %s23, 0
      %p92 = por %p90, %p91
      %s94 = sadd.s32 %s93, 1
      %p97 = scmp.eq.s32.totalorder %s17, 3
      %p98 = scmp.ne.s32.totalorder %s93, %s95
      %p99 = scmp.eq.s32.totalorder %s17, 0
      %p100 = por %p98, %p99
      %p101 = scmp.ne.s32.totalorder %s93, %s95
      %p102 = scmp.eq.s32.totalorder %s22, 3
      %p103 = por %p101, %p102
      %p104 = scmp.ne.s32.totalorder %s95, %s96
      %p105 = scmp.eq.s32.totalorder %s22, 0
      %p106 = por %p104, %p105
      %p107 = scmp.ne.s32.totalorder %s95, %s96
      %p108 = scmp.eq.s32.totalorder %s23, 3
      %p109 = por %p107, %p108
      %p111 = scmp.ne.s32.totalorder %s96, %s110
      %p112 = scmp.eq.s32.totalorder %s23, 0
      %p113 = por %p111, %p112
      %s114 = ssub.s32 %s17, %s24
      %p115 = scmp.eq.s32.totalorder %s114, 0
      %s117 = sadd.s32 %s116, 1
      %s118 = scalar_select %p115, %s116, %s117
      %p121 = pneg %p115
      %p122 = scmp.eq.s32.totalorder %s17, 3
      %p123 = por %p121, %p122
      %p124 = scmp.ne.s32.totalorder %s116, %s119
      %p125 = scmp.eq.s32.totalorder %s17, 0
      %p126 = por %p124, %p125
      %p127 = scmp.ne.s32.totalorder %s116, %s119
      %p128 = scmp.eq.s32.totalorder %s22, 3
      %p129 = por %p127, %p128
      %p130 = scmp.ne.s32.totalorder %s119, %s120
      %p131 = scmp.eq.s32.totalorder %s22, 0
      %p132 = por %p130, %p131
      %p133 = scmp.ne.s32.totalorder %s119, %s120
      %p134 = scmp.eq.s32.totalorder %s23, 3
      %p135 = por %p133, %p134
      %p137 = scmp.ne.s32.totalorder %s120, %s136
      %p138 = scmp.eq.s32.totalorder %s23, 0
      %p139 = por %p137, %p138
      %p140 = scmp.le.s32.totalorder 1, %s17
      %p141 = scmp.lt.s32.totalorder %s17, 5
      %p142 = pnand %p140, %p141
      %p143 = pneg %p142
      // Predicated region
      $region9: #{tpu_custom_call.1} parent=5 // pred_check
        _
      $region10: #{tpu_custom_call.1} parent=5 // pred_check_branch
        %145 = sbr.rel (%p142) target = $region12
      $region11: #{tpu_custom_call.1} parent=5 // pred_region
        %s146 = ssub.s32 %s17, 1
        // Predicated region
        $region13: #{tpu_custom_call.1} parent=11 // pred_check
          %p147 = pneg %p64
        $region14: #{tpu_custom_call.1} parent=11 // pred_check_branch
          %149 = sbr.rel (%p147) target = $region16
        $region15: #{tpu_custom_call.1} parent=11 // pred_region
          %s151 = ssub.s32 1024, 1024
          %152 = vsyncadd [#allocation6], %s151
          %s153 = sshll.u32 [#allocation5], 4
          %s154 = int_to_ptr.vmem [resolvable:$true] %s153
          %159 = dma.hbm_to_vmem [thread:$0]  %s1, 1024, %s154, [#allocation6], 128, 128, 8
        $region16: #{tpu_custom_call.1} parent=11 // pred_fallthru
          _
        // Predicated region
        $region17: #{tpu_custom_call.1} parent=11 // pred_check
          %p160 = pneg %p85
        $region18: #{tpu_custom_call.1} parent=11 // pred_check_branch
          %162 = sbr.rel (%p160) target = $region20
        $region19: #{tpu_custom_call.1} parent=11 // pred_region
          %s164 = ssub.s32 2048, 2048
          %165 = vsyncadd [#allocation6], %s164
          %s166 = sshll.u32 [#allocation7], 4
          %s167 = int_to_ptr.vmem [resolvable:$true] %s166
          %172 = dma.hbm_to_vmem [thread:$0]  %s2, 2048, %s167, [#allocation6], 128, 128, 8
        $region20: #{tpu_custom_call.1} parent=11 // pred_fallthru
          _
        // Predicated region
        $region21: #{tpu_custom_call.1} parent=11 // pred_check
          %p173 = pneg %p106
        $region22: #{tpu_custom_call.1} parent=11 // pred_check_branch
          %175 = sbr.rel (%p173) target = $region24
        $region23: #{tpu_custom_call.1} parent=11 // pred_region
          _
        $region24: #{tpu_custom_call.1} parent=11 // pred_fallthru
          _
      $region12: #{tpu_custom_call.1} parent=5 // pred_fallthru
        _
      %p176 = scmp.lt.s32.totalorder %s17, 4
      // Predicated region
      $region25: #{tpu_custom_call.1} parent=5 // pred_check
        %p177 = pneg %p176
      $region26: #{tpu_custom_call.1} parent=5 // pred_check_branch
        %179 = sbr.rel (%p177) target = $region28
      $region27: #{tpu_custom_call.1} parent=5 // pred_region
        // Predicated region
        $region29: #{tpu_custom_call.1} parent=27 // pred_check
          %p180 = pneg %p37
        $region30: #{tpu_custom_call.1} parent=27 // pred_check_branch
          %182 = sbr.rel (%p180) target = $region32
        $region31: #{tpu_custom_call.1} parent=27 // pred_region
          %s183 = sand.u32 %s27, 1
          %s184 = scalar_lea.sflag [#allocation3], %s183
          %s185 = sand.u32 %s27, 1
          %s186 = smul.addr %s185, 16
          %s187 = scalar_lea.vmem [#allocation2], %s186
          %s188 = smul.u32 2, %s17
          %s190 = ssub.s32 256, 256
          %191 = vsyncadd %s184, %s190
          %s192 = smul.addr %s188, 128
          %s193 = scalar_lea.hbm %s0, %s192
          %s194 = sshll.u32 %s187, 4
          %s195 = int_to_ptr.vmem [resolvable:$true] %s194
          %200 = dma.hbm_to_vmem [thread:$0]  %s193, 256, %s195, %s184, 128, 128, 8
        $region32: #{tpu_custom_call.1} parent=27 // pred_fallthru
          _
      $region28: #{tpu_custom_call.1} parent=5 // pred_fallthru
        _
      %p201 = scmp.le.s32.totalorder 1, %s17
      %p202 = scmp.lt.s32.totalorder %s17, 5
      %p203 = pnand %p201, %p202
      %p204 = pneg %p203
      // Predicated region
      $region33: #{tpu_custom_call.1} parent=5 // pred_check
        _
      $region34: #{tpu_custom_call.1} parent=5 // pred_check_branch
        %206 = sbr.rel (%p203) target = $region36
      $region35: #{tpu_custom_call.1} parent=5 // pred_region
        %s207 = ssub.s32 %s17, 1
        %s208 = sand.u32 %s30, 1
        %s209 = scalar_lea.sflag [#allocation3], %s208
        %s210 = sand.u32 %s30, 1
        %s211 = smul.addr %s210, 16
        %s212 = scalar_lea.vmem [#allocation2], %s211
        // Predicated region
        $region37: #{tpu_custom_call.1} parent=35 // pred_check
          %p213 = pneg %p43
        $region38: #{tpu_custom_call.1} parent=35 // pred_check_branch
          %215 = sbr.rel (%p213) target = $region40
        $region39: #{tpu_custom_call.1} parent=35 // pred_region
          %216 = dma.done %s209, 256
        $region40: #{tpu_custom_call.1} parent=35 // pred_fallthru
          _
        // Predicated region
        $region41: #{tpu_custom_call.1} parent=35 // pred_check
          %p217 = pneg %p64
        $region42: #{tpu_custom_call.1} parent=35 // pred_check_branch
          %219 = sbr.rel (%p217) target = $region44
        $region43: #{tpu_custom_call.1} parent=35 // pred_region
          %220 = dma.done [#allocation6], 1024
        $region44: #{tpu_custom_call.1} parent=35 // pred_fallthru
          _
        // Predicated region
        $region45: #{tpu_custom_call.1} parent=35 // pred_check
          %p221 = pneg %p85
        $region46: #{tpu_custom_call.1} parent=35 // pred_check_branch
          %223 = sbr.rel (%p221) target = $region48
        $region47: #{tpu_custom_call.1} parent=35 // pred_region
          %224 = dma.done [#allocation6], 2048
        $region48: #{tpu_custom_call.1} parent=35 // pred_fallthru
          _
        %s225 = sand.u32 %s30, 1
        %s226 = scalar_lea.sflag [#allocation3], %s225
        %s227 = sand.u32 %s30, 1
        %s228 = smul.addr %s227, 16
        %s229 = scalar_lea.vmem [#allocation2], %s228
        %p230 = pneg %p43
        %p231 = pneg %p40
        %p232 = pneg %p64
        %p233 = pneg %p61
        %p234 = pneg %p85
        %p235 = pneg %p82
        %p236 = pneg %p106
        %p237 = pneg %p103
        %p238 = pneg %p132
        %p239 = pneg %p129
        %s240 = sand.u32 %s119, 1
        %s241 = scalar_lea.sflag [#allocation4], %s240
        %s242 = sand.u32 %s119, 1
        %s243 = smul.addr %s242, 16
        %s244 = scalar_lea.vmem [#allocation8], %s243
        %s245 = smul.u32 2, %s22
        %s246 = smul.u32 2, %s22
        %s247 = smul.u32 %s22, 16
        %v248 = vld [vmem:[%s212] sm:$0xff]
        %v249 = vld [vmem:[%s212 + $0x8] sm:$0xff]
        %v250 = vld [vmem:[#allocation5] sm:$0xff]
        %v251 = vld [vmem:[#allocation5 + $0x8] sm:$0xff]
        %v252 = vld [vmem:[#allocation5 + $0x10] sm:$0xff]
        %v253 = vld [vmem:[#allocation5 + $0x18] sm:$0xff]
        %v254 = vld [vmem:[#allocation5 + $0x20] sm:$0xff]
        %v255 = vld [vmem:[#allocation5 + $0x28] sm:$0xff]
        %v256 = vld [vmem:[#allocation5 + $0x30] sm:$0xff]
        %v257 = vld [vmem:[#allocation5 + $0x38] sm:$0xff]
        %s258 = scalar_lea.vmem [#allocation5], %s247
        %v259 = vld [vmem:[%s258] sm:$0xff]
        %v260 = vld [vmem:[%s258 + $0x8] sm:$0xff]
        %vm261 = vcmask 523264
        %v262 = vsel %vm261, %v248, 0.0
        %263 = vadd.xlane.f32.xlu0 %v262
        %v264 = vpop.xlane.xlu0 %263
        %v265 = vsel %vm261, %v249, 0.0
        %266 = vadd.xlane.f32.xlu0 %v265
        %v267 = vpop.xlane.xlu0 %266
        %v268 = vmax.f32 %v264, 1.0
        %v269 = vmax.f32 %v267, 1.0
        %v271 = vsel %vm261, %v248, 0
        %v274 = vsel %vm261, %v249, 0
        %276 = vmatprep.subr.mxu0 0.0
        %277 = vmatpush1.msra.mxu0 0.0
        %278 = vmatprep.subr.mxu0 0.0
        %279 = vmatpush1.msra.mxu0 0.0
        %280 = vmatprep.subr.mxu0 0.0
        %281 = vmatpush1.msra.mxu0 0.0
        %282 = vmatprep.subr.mxu0 0.0
        %283 = vmatpush1.msra.mxu0 0.0
        %284 = vmatprep.subr.mxu0 0.0
        %285 = vmatpush1.msra.mxu0 0.0
        %286 = vmatprep.subr.mxu0 0.0
        %287 = vmatpush1.msra.mxu0 0.0
        %288 = vmatprep.subr.mxu0 0.0
        %289 = vmatpush1.msra.mxu0 0.0
        %290 = vmatprep.subr.mxu0 0.0
        %291 = vmatpush1.msra.mxu0 0.0
        %292 = vmatprep.subr.mxu0 0.0
        %293 = vmatpush1.msra.mxu0 %v257
        %294 = vmatprep.subr.mxu0 0.0
        %295 = vmatpush1.msra.mxu0 %v256
        %296 = vmatprep.subr.mxu0 0.0
        %297 = vmatpush1.msra.mxu0 %v255
        %298 = vmatprep.subr.mxu0 0.0
        %299 = vmatpush1.msra.mxu0 %v254
        %300 = vmatprep.subr.mxu0 0.0
        %301 = vmatpush1.msra.mxu0 %v253
        %302 = vmatprep.subr.mxu0 0.0
        %303 = vmatpush1.msra.mxu0 %v252
        %304 = vmatprep.subr.mxu0 0.0
        %305 = vmatpush1.msra.mxu0 %v251
        %306 = vmatprep.subr.mxu0 0.0
        %307 = vmatpush1.msra.mxu0 %v250
        %308 = vmatprep.subr.mxu0 0.0
        %309 = vmatpush2.msra.mxu0 0.0
        %310 = vmatprep.subr.mxu0 0.0
        %311 = vmatpush2.msra.mxu0 0.0
        %312 = vmatprep.subr.mxu0 0.0
        %313 = vmatpush2.msra.mxu0 0.0
        %314 = vmatprep.subr.mxu0 0.0
        %315 = vmatpush2.msra.mxu0 0.0
        %316 = vmatprep.subr.mxu0 0.0
        %317 = vmatpush2.msra.mxu0 0.0
        %318 = vmatprep.subr.mxu0 0.0
        %319 = vmatpush2.msra.mxu0 0.0
        %320 = vmatprep.subr.mxu0 0.0
        %321 = vmatpush2.msra.mxu0 0.0
        %322 = vmatprep.subr.mxu0 0.0
        %323 = vmatpush2.msra.mxu0 0.0
        %324 = vmatprep.subr.mxu0 0.0
        %325 = vmatpush2.msra.mxu0 0.0
        %326 = vmatprep.subr.mxu0 0.0
        %327 = vmatpush2.msra.mxu0 0.0
        %328 = vmatprep.subr.mxu0 0.0
        %329 = vmatpush2.msra.mxu0 0.0
        %330 = vmatprep.subr.mxu0 0.0
        %331 = vmatpush2.msra.mxu0 0.0
        %332 = vmatprep.subr.mxu0 0.0
        %333 = vmatpush2.msra.mxu0 0.0
        %334 = vmatprep.subr.mxu0 0.0
        %335 = vmatpush2.msra.mxu0 0.0
        %336 = vmatprep.subr.mxu0 0.0
        %337 = vmatpush2.msra.mxu0 0.0
        %338 = vmatprep.subr.mxu0 0.0
        %339 = vmatpush2.msra.mxu0 0.0
        %340 = vmatprep.mubr.f32.mxu0 0.0
        %341 = vmatmul.mubr.f32.gmra.mxu0 %v271
        %v342 = vpop.f32.mrf.mxu0
        %v343 = vadd.f32 %v259, %v342
        %v344 = vpop.f32.mrf.mxu0
        %345 = vmatprep.mubr.f32.mxu0 0.0
        %346 = vmatmul.mubr.f32.gmra.mxu0 %v274
        %v347 = vpop.f32.mrf.mxu0
        %v348 = vadd.f32 %v260, %v347
        %v349 = vpop.f32.mrf.mxu0
        %350 = vdwg.mxu0
        %v351 = vrcp.pop %v268
        %v352 = vmul.f32 %v343, %v351
        %v353 = vrcp.pop %v269
        %v354 = vmul.f32 %v348, %v353
        %v355 = vld [vmem:[#allocation7] sm:$0xff]
        %v356 = vld [vmem:[#allocation7 + $0x8] sm:$0xff]
        %v357 = vld [vmem:[#allocation7 + $0x10] sm:$0xff]
        %v358 = vld [vmem:[#allocation7 + $0x18] sm:$0xff]
        %v359 = vld [vmem:[#allocation7 + $0x20] sm:$0xff]
        %v360 = vld [vmem:[#allocation7 + $0x28] sm:$0xff]
        %v361 = vld [vmem:[#allocation7 + $0x30] sm:$0xff]
        %v362 = vld [vmem:[#allocation7 + $0x38] sm:$0xff]
        %v363 = vld [vmem:[#allocation7 + $0x40] sm:$0xff]
        %v364 = vld [vmem:[#allocation7 + $0x48] sm:$0xff]
        %v365 = vld [vmem:[#allocation7 + $0x50] sm:$0xff]
        %v366 = vld [vmem:[#allocation7 + $0x58] sm:$0xff]
        %v367 = vld [vmem:[#allocation7 + $0x60] sm:$0xff]
        %v368 = vld [vmem:[#allocation7 + $0x68] sm:$0xff]
        %v369 = vld [vmem:[#allocation7 + $0x70] sm:$0xff]
        %v370 = vld [vmem:[#allocation7 + $0x78] sm:$0xff]
        %v371 = vld [vmem:[%s3] sm:$0x1]
        %v373 = vlaneseq
        %v374 = vshrl.u32 %v373, 7
        %v375 = vsub.s32 0, %v374
        %v376 = vrot.slane %v371, %v375
        %378 = vmatprep.subr.mxu0 0.0
        %379 = vmatpush1.msra.mxu0 %v370
        %380 = vmatprep.subr.mxu0 0.0
        %381 = vmatpush1.msra.mxu0 %v369
        %382 = vmatprep.subr.mxu0 0.0
        %383 = vmatpush1.msra.mxu0 %v368
        %384 = vmatprep.subr.mxu0 0.0
        %385 = vmatpush1.msra.mxu0 %v367
        %386 = vmatprep.subr.mxu0 0.0
        %387 = vmatpush1.msra.mxu0 %v366
        %388 = vmatprep.subr.mxu0 0.0
        %389 = vmatpush1.msra.mxu0 %v365
        %390 = vmatprep.subr.mxu0 0.0
        %391 = vmatpush1.msra.mxu0 %v364
        %392 = vmatprep.subr.mxu0 0.0
        %393 = vmatpush1.msra.mxu0 %v363
        %394 = vmatprep.subr.mxu0 0.0
        %395 = vmatpush1.msra.mxu0 %v362
        %396 = vmatprep.subr.mxu0 0.0
        %397 = vmatpush1.msra.mxu0 %v361
        %398 = vmatprep.subr.mxu0 0.0
        %399 = vmatpush1.msra.mxu0 %v360
        %400 = vmatprep.subr.mxu0 0.0
        %401 = vmatpush1.msra.mxu0 %v359
        %402 = vmatprep.subr.mxu0 0.0
        %403 = vmatpush1.msra.mxu0 %v358
        %404 = vmatprep.subr.mxu0 0.0
        %405 = vmatpush1.msra.mxu0 %v357
        %406 = vmatprep.subr.mxu0 0.0
        %407 = vmatpush1.msra.mxu0 %v356
        %408 = vmatprep.subr.mxu0 0.0
        %409 = vmatpush1.msra.mxu0 %v355
        %410 = vmatprep.subr.mxu0 0.0
        %411 = vmatpush2.msra.mxu0 0.0
        %412 = vmatprep.subr.mxu0 0.0
        %413 = vmatpush2.msra.mxu0 0.0
        %414 = vmatprep.subr.mxu0 0.0
        %415 = vmatpush2.msra.mxu0 0.0
        %416 = vmatprep.subr.mxu0 0.0
        %417 = vmatpush2.msra.mxu0 0.0
        %418 = vmatprep.subr.mxu0 0.0
        %419 = vmatpush2.msra.mxu0 0.0
        %420 = vmatprep.subr.mxu0 0.0
        %421 = vmatpush2.msra.mxu0 0.0
        %422 = vmatprep.subr.mxu0 0.0
        %423 = vmatpush2.msra.mxu0 0.0
        %424 = vmatprep.subr.mxu0 0.0
        %425 = vmatpush2.msra.mxu0 0.0
        %426 = vmatprep.subr.mxu0 0.0
        %427 = vmatpush2.msra.mxu0 0.0
        %428 = vmatprep.subr.mxu0 0.0
        %429 = vmatpush2.msra.mxu0 0.0
        %430 = vmatprep.subr.mxu0 0.0
        %431 = vmatpush2.msra.mxu0 0.0
        %432 = vmatprep.subr.mxu0 0.0
        %433 = vmatpush2.msra.mxu0 0.0
        %434 = vmatprep.subr.mxu0 0.0
        %435 = vmatpush2.msra.mxu0 0.0
        %436 = vmatprep.subr.mxu0 0.0
        %437 = vmatpush2.msra.mxu0 0.0
        %438 = vmatprep.subr.mxu0 0.0
        %439 = vmatpush2.msra.mxu0 0.0
        %440 = vmatprep.subr.mxu0 0.0
        %441 = vmatpush2.msra.mxu0 0.0
        %442 = vmatprep.mubr.f32.mxu0 0.0
        %443 = vmatmul.mubr.f32.gmra.mxu0 %v352
        %v444 = vpop.f32.mrf.mxu0
        %v445 = vadd.f32 %v376, %v444
        %v446 = vpop.f32.mrf.mxu0
        %447 = vmatprep.mubr.f32.mxu0 0.0
        %448 = vmatmul.mubr.f32.gmra.mxu0 %v354
        %v449 = vpop.f32.mrf.mxu0
        %v450 = vadd.f32 %v376, %v449
        %v451 = vpop.f32.mrf.mxu0
        %452 = vdwg.mxu0
        %v453 = vmax.f32 %v445, 0.0
        %v454 = vmax.f32 %v450, 0.0
        %455 = vst [vmem:[%s244] sm:$0xff] %v453
        %456 = vst [vmem:[%s244 + $0x8] sm:$0xff] %v454
        %s457 = sand.u32 %s119, 1
        %s458 = scalar_lea.sflag [#allocation4], %s457
        %s459 = sand.u32 %s119, 1
        %s460 = smul.addr %s459, 16
        %s461 = scalar_lea.vmem [#allocation8], %s460
        // Predicated region
        $region49: #{tpu_custom_call.1} parent=35 // pred_check
          %p462 = pneg %p129
        $region50: #{tpu_custom_call.1} parent=35 // pred_check_branch
          %464 = sbr.rel (%p462) target = $region52
        $region51: #{tpu_custom_call.1} parent=35 // pred_region
          %s465 = smul.u32 2, %s22
          %s467 = ssub.s32 256, 256
          %468 = vsyncadd %s458, %s467
          %s469 = smul.addr %s465, 128
          %s470 = scalar_lea.hbm %s4, %s469
          %s471 = sshll.u32 %s461, 4
          %s472 = int_to_ptr.vmem [resolvable:$true] %s471
          %477 = dma.vmem_to_hbm [thread:$0]  %s472, 256, %s470, %s458, 128, 128, 8
        $region52: #{tpu_custom_call.1} parent=35 // pred_fallthru
          _
      $region36: #{tpu_custom_call.1} parent=5 // pred_fallthru
        _
      %p478 = scmp.le.s32.totalorder 2, %s17
      // Predicated region
      $region53: #{tpu_custom_call.1} parent=5 // pred_check
        %p479 = pneg %p478
      $region54: #{tpu_custom_call.1} parent=5 // pred_check_branch
        %481 = sbr.rel (%p479) target = $region56
      $region55: #{tpu_custom_call.1} parent=5 // pred_region
        %s482 = ssub.s32 %s17, 2
        // Predicated region
        $region57: #{tpu_custom_call.1} parent=55 // pred_check
          %p483 = pneg %p135
        $region58: #{tpu_custom_call.1} parent=55 // pred_check_branch
          %485 = sbr.rel (%p483) target = $region60
        $region59: #{tpu_custom_call.1} parent=55 // pred_region
          %s486 = sand.u32 %s120, 1
          %s487 = scalar_lea.sflag [#allocation4], %s486
          %s488 = sand.u32 %s120, 1
          %s489 = smul.addr %s488, 16
          %s490 = scalar_lea.vmem [#allocation8], %s489
          %491 = dma.done %s487, 256
        $region60: #{tpu_custom_call.1} parent=55 // pred_fallthru
          _
      $region56: #{tpu_custom_call.1} parent=5 // pred_fallthru
        _
    $region6: #{tpu_custom_call.1} parent=1 // loop_footer
      %s21 = sadd.s32 1, %s17
    $region7: #{tpu_custom_call.1} parent=1 // loop_footer_branch
      %16 = sbr.rel target = $region3
    $region8: #{tpu_custom_call.1} parent=1 // loop_exit
      _
    %492 = vsyncpa [#allocation3], 1
    %s493 = scalar_lea.sflag [#allocation3], 1
    %494 = vsyncpa %s493, 1
    %495 = vsyncpa [#allocation6], 1
    %496 = vsyncpa [#allocation4], 1
    %s497 = scalar_lea.sflag [#allocation4], 1
    %498 = vsyncpa %s497, 1

</llo_original>
